<compile_context>
chip_gen: v7x
topology: tpu7x:2x2x1
jax: 0.10.0
libtpu: 0.0.40
codegen_flags: <defaults>
</compile_context>

<pallas_src>
import functools

import jax
import jax.numpy as jnp
from jax.experimental import pallas as pl
from jax.experimental.pallas import tpu as pltpu


# ---------------------------------------------------------------------------
# Kernels
# ---------------------------------------------------------------------------

def _se_kernel_nchw(x_ref, w1t_ref, s1_ref, b1_ref, w2t_ref, s2_ref, b2_ref,
                    o_ref, *, inv_hw):
    # x block: (B, C, HW).  Pool in f32 regardless of input dtype.
    pooled = jnp.sum(x_ref[...].astype(jnp.float32), axis=2) * inv_hw   # (B, C)

    # 1x1 conv (no bias) == (B, C) @ (C, Cmid); folded BN; ReLU.
    h = jnp.dot(pooled, w1t_ref[...], preferred_element_type=jnp.float32)
    h = jnp.maximum(h * s1_ref[...] + b1_ref[...], 0.0)                 # (B, Cmid)

    # 1x1 conv (no bias) == (B, Cmid) @ (Cmid, C); folded BN.
    y = jnp.dot(h, w2t_ref[...], preferred_element_type=jnp.float32)
    y = y * s2_ref[...] + b2_ref[...]                                   # (B, C)

    # hsigmoid: relu6(y + 3) / 6
    gate = jnp.clip(y + 3.0, 0.0, 6.0) * (1.0 / 6.0)                    # (B, C)

    # Re-read x_ref here so the full block is streamed from the input VMEM
    # buffer at the multiply instead of being held live across the MLP.
    o_ref[...] = (x_ref[...].astype(jnp.float32)
                  * gate[:, :, None]).astype(o_ref.dtype)


def _se_kernel_nhwc(x_ref, w1t_ref, s1_ref, b1_ref, w2t_ref, s2_ref, b2_ref,
                    o_ref, *, inv_hw):
    # x block: (B, HW, C) — C on the lane axis (lane-dense for small HW).
    pooled = jnp.sum(x_ref[...].astype(jnp.float32), axis=1) * inv_hw   # (B, C)

    h = jnp.dot(pooled, w1t_ref[...], preferred_element_type=jnp.float32)
    h = jnp.maximum(h * s1_ref[...] + b1_ref[...], 0.0)                 # (B, Cmid)

    y = jnp.dot(h, w2t_ref[...], preferred_element_type=jnp.float32)
    y = y * s2_ref[...] + b2_ref[...]                                   # (B, C)

    gate = jnp.clip(y + 3.0, 0.0, 6.0) * (1.0 / 6.0)                    # (B, C)

    o_ref[...] = (x_ref[...].astype(jnp.float32)
                  * gate[:, None, :]).astype(o_ref.dtype)


# ---------------------------------------------------------------------------
# Sizing helpers (generation-aware)
# ---------------------------------------------------------------------------

def _vmem_budgets():
    """(data_budget_bytes, vmem_limit_bytes, physical_vmem_bytes)."""
    phys = 64 << 20  # conservative default (v7x floor) if the query fails
    try:
        info = pltpu.get_tpu_info()
        phys = int(getattr(info, "vmem_capacity_bytes", phys))
    except Exception:
        pass
    if phys <= (64 << 20):                 # v7x-class: 64 MiB physical
        return 40 << 20, 56 << 20, phys
    return 88 << 20, 108 << 20, phys       # v5e / v6e: 128 MiB physical


def _is_multi_tensorcore():
    """True on chips with >1 TensorCore per device (v7x, v4/v5p megacore)."""
    try:
        kind = str(getattr(jax.devices()[0], "device_kind", "")).lower()
    except Exception:
        return False
    return any(tag in kind for tag in ("v7", "v4", "v5p"))


def _choose_batch_block(n, c, hw, itemsize, data_budget, param_bytes, multi_tc):
    """Largest divisor of n whose double-buffered in+out (plus the
    double-buffered SE weights) fits the data budget; on multi-TC chips also
    keep >= 2 grid steps and prefer an even grid length."""
    avail = max(data_budget - 2 * param_bytes, 1)
    per_sample = max(4 * c * hw * itemsize, 1)     # 2x-buffered input + output
    cap = max(1, min(n, avail // per_sample))
    if multi_tc and n >= 2:
        cap = min(cap, max(1, n // 2))             # >= 2 steps for the 2 TCs
    divisors = [b for b in range(cap, 0, -1) if n % b == 0]
    if multi_tc and n >= 2:
        even = [b for b in divisors if (n // b) % 2 == 0]
        if even:
            return even[0]
    return divisors[0] if divisors else 1


# ---------------------------------------------------------------------------
# Wrapper
# ---------------------------------------------------------------------------

def se_module_pallas(x, w1, s1, b1, w2, s2, b2, *, channels_last=False,
                     donate_input=False):
    """SE-module forward.

    x : (N, C, H, W) if channels_last=False, else (N, H, W, C). f32 or bf16.
    w1: (Cmid, C)    -- first 1x1 conv weight (bias-free).
    w2: (C, Cmid)    -- second 1x1 conv weight (bias-free).
    s1/b1, s2/b2: folded BatchNorm scale/shift (1D).
    """
    if channels_last:
        N, H, W, C = x.shape
    else:
        N, C, H, W = x.shape
    Cmid = w1.shape[0]
    HW = H * W

    # Lane-friendly parameter plumbing (all tiny; done once in the wrapper).
    w1t = jnp.transpose(w1).astype(jnp.float32)        # (C, Cmid)
    w2t = jnp.transpose(w2).astype(jnp.float32)        # (Cmid, C)
    s1r = s1.reshape(1, Cmid).astype(jnp.float32)
    b1r = b1.reshape(1, Cmid).astype(jnp.float32)
    s2r = s2.reshape(1, C).astype(jnp.float32)
    b2r = b2.reshape(1, C).astype(jnp.float32)

    data_budget, vmem_limit, phys = _vmem_budgets()
    multi_tc = _is_multi_tensorcore()
    param_bytes = 4 * (2 * C * Cmid + 2 * Cmid + 2 * C)

    b_blk = _choose_batch_block(N, C, HW, x.dtype.itemsize, data_budget,
                                param_bytes, multi_tc)
    grid = (N // b_blk,)
    # TODO(synk): on v7x a 1-step grid (e.g. batch-1 inference) runs on a
    # single TensorCore; using both would need a two-phase kernel (HW-tiled
    # pooling pass, then an HW-tiled apply pass with the precomputed gate).

    # Robustness: if even a single sample overflows the default budget, raise
    # the VMEM limit (with headroom below physical) instead of failing on the
    # generation default.
    needed_b1 = 2 * param_bytes + 4 * C * HW * x.dtype.itemsize
    vmem_limit = int(max(vmem_limit,
                         min(phys - (8 << 20), needed_b1 * 5 // 4)))

    if channels_last:
        x_flat = x.reshape(N, HW, C)
        blk = (b_blk, HW, C)
        kernel = functools.partial(_se_kernel_nhwc, inv_hw=1.0 / HW)
    else:
        x_flat = x.reshape(N, C, HW)
        blk = (b_blk, C, HW)
        kernel = functools.partial(_se_kernel_nchw, inv_hw=1.0 / HW)

    data_spec = pl.BlockSpec(blk, lambda n: (n, 0, 0))
    param_spec = lambda shape: pl.BlockSpec(shape, lambda n: (0, 0))

    out_flat = pl.pallas_call(
        kernel,
        out_shape=jax.ShapeDtypeStruct(x_flat.shape, x.dtype),
        grid_spec=pltpu.PrefetchScalarGridSpec(
            num_scalar_prefetch=0,
            grid=grid,
            in_specs=[
                data_spec,               # x
                param_spec((C, Cmid)),   # w1^T
                param_spec((1, Cmid)),   # bn1 scale
                param_spec((1, Cmid)),   # bn1 shift
                param_spec((Cmid, C)),   # w2^T
                param_spec((1, C)),      # bn2 scale
                param_spec((1, C)),      # bn2 shift
            ],
            out_specs=data_spec,
        ),
        compiler_params=pltpu.CompilerParams(
            dimension_semantics=("parallel",),
            vmem_limit_bytes=vmem_limit,
        ),
        input_output_aliases=({0: 0} if donate_input else {}),
    )(x_flat, w1t, s1r, b1r, w2t, s2r, b2r)

    return out_flat.reshape(x.shape)


# ---------------------------------------------------------------------------
# Reference / test harness
# ---------------------------------------------------------------------------

def _fold_bn(gamma, beta, mean, var, eps=1e-5):
    scale = gamma / jnp.sqrt(var + eps)
    shift = beta - mean * scale
    return scale.astype(jnp.float32), shift.astype(jnp.float32)


def _reference(x, w1, g1, be1, m1, v1, w2, g2, be2, m2, v2, eps=1e-5):
    pooled = jnp.mean(x, axis=(2, 3))                                # (N, C)
    h = pooled @ w1.T                                                # (N, Cmid)
    h = (h - m1) / jnp.sqrt(v1 + eps) * g1 + be1
    h = jnp.maximum(h, 0.0)
    y = h @ w2.T                                                     # (N, C)
    y = (y - m2) / jnp.sqrt(v2 + eps) * g2 + be2
    gate = jnp.clip(y + 3.0, 0.0, 6.0) / 6.0
    return x * gate[:, :, None, None]


if __name__ == "__main__":
    N, C, H, W = 2, 8, 16, 16
    reduction = 4
    Cmid = C // reduction

    key = jax.random.PRNGKey(0)
    keys = jax.random.split(key, 11)

    x = jax.random.normal(keys[0], (N, C, H, W), dtype=jnp.float32)

    # Conv2d 1x1, bias=False -> weight (out, in, 1, 1); squeeze to (out, in).
    w1 = (jax.random.normal(keys[1], (Cmid, C, 1, 1), dtype=jnp.float32) * 0.2)[:, :, 0, 0]
    w2 = (jax.random.normal(keys[2], (C, Cmid, 1, 1), dtype=jnp.float32) * 0.2)[:, :, 0, 0]

    # BatchNorm params (deterministic, non-trivial).
    g1 = jax.random.uniform(keys[3], (Cmid,), minval=0.5, maxval=1.5)
    be1 = jax.random.normal(keys[4], (Cmid,)) * 0.1
    m1 = jax.random.normal(keys[5], (Cmid,)) * 0.1
    v1 = jax.random.uniform(keys[6], (Cmid,), minval=0.5, maxval=1.5)

    g2 = jax.random.uniform(keys[7], (C,), minval=0.5, maxval=1.5)
    be2 = jax.random.normal(keys[8], (C,)) * 0.1
    m2 = jax.random.normal(keys[9], (C,)) * 0.1
    v2 = jax.random.uniform(keys[10], (C,), minval=0.5, maxval=1.5)

    s1, b1 = _fold_bn(g1, be1, m1, v1)
    s2, b2 = _fold_bn(g2, be2, m2, v2)

    ref = _reference(x, w1, g1, be1, m1, v1, w2, g2, be2, m2, v2)

    # 1) Default NCHW f32 path.
    out = jax.block_until_ready(se_module_pallas(x, w1, s1, b1, w2, s2, b2))
    assert out.shape == x.shape and out.dtype == x.dtype
    assert jnp.allclose(out, ref, atol=2e-5, rtol=1e-4)

    # 2) Channels-last f32 path (lane-dense for small-HW SE sites).
    x_nhwc = jnp.transpose(x, (0, 2, 3, 1))
    out_cl = jax.block_until_ready(
        se_module_pallas(x_nhwc, w1, s1, b1, w2, s2, b2, channels_last=True))
    assert out_cl.shape == x_nhwc.shape and out_cl.dtype == x_nhwc.dtype
    assert jnp.allclose(jnp.transpose(out_cl, (0, 3, 1, 2)), ref,
                        atol=2e-5, rtol=1e-4)

    # 3) bf16 I/O, f32 accumulation inside the kernel.
    x_bf = x.astype(jnp.bfloat16)
    out_bf = jax.block_until_ready(se_module_pallas(x_bf, w1, s1, b1, w2, s2, b2))
    assert out_bf.dtype == jnp.bfloat16 and out_bf.shape == x.shape
    ref_bf = _reference(x_bf.astype(jnp.float32), w1, g1, be1, m1, v1,
                        w2, g2, be2, m2, v2)
    assert jnp.allclose(out_bf.astype(jnp.float32), ref_bf, atol=3e-2, rtol=3e-2)

    print("KERNEL_OK")
</pallas_src>

<mosaic_0001>
module attributes {stable_mosaic.version = 11 : i64} {
  func.func @_se_kernel_nchw(%arg0: i32, %arg1: memref<2x8x256xf32, #tpu.memory_space<vmem>>, %arg2: memref<8x2xf32, #tpu.memory_space<vmem>>, %arg3: memref<1x2xf32, #tpu.memory_space<vmem>>, %arg4: memref<1x2xf32, #tpu.memory_space<vmem>>, %arg5: memref<2x8xf32, #tpu.memory_space<vmem>>, %arg6: memref<1x8xf32, #tpu.memory_space<vmem>>, %arg7: memref<1x8xf32, #tpu.memory_space<vmem>>, %arg8: memref<2x8x256xf32, #tpu.memory_space<vmem>>) attributes {dimension_semantics = [#tpu.dimension_semantics<parallel>], iteration_bounds = array<i64: 1>, scalar_prefetch = 0 : i64, scratch_operands = 0 : i64, tpu.core_type = #tpu.core_type<tc>, window_params = [{transform_indices = @transform_0, window_bounds = array<i64: 2, 8, 256>}, {pipeline_mode = #tpu.pipeline_mode<synchronous>, transform_indices = @transform_1, window_bounds = array<i64: 8, 2>}, {pipeline_mode = #tpu.pipeline_mode<synchronous>, transform_indices = @transform_2, window_bounds = array<i64: 1, 2>}, {pipeline_mode = #tpu.pipeline_mode<synchronous>, transform_indices = @transform_3, window_bounds = array<i64: 1, 2>}, {pipeline_mode = #tpu.pipeline_mode<synchronous>, transform_indices = @transform_4, window_bounds = array<i64: 2, 8>}, {pipeline_mode = #tpu.pipeline_mode<synchronous>, transform_indices = @transform_5, window_bounds = array<i64: 1, 8>}, {pipeline_mode = #tpu.pipeline_mode<synchronous>, transform_indices = @transform_6, window_bounds = array<i64: 1, 8>}, {transform_indices = @transform_7, window_bounds = array<i64: 2, 8, 256>}]} {
    %c0 = arith.constant 0 : index
    %c0_0 = arith.constant 0 : index
    %c0_1 = arith.constant 0 : index
    %0 = vector.load %arg1[%c0, %c0_0, %c0_1] : memref<2x8x256xf32, #tpu.memory_space<vmem>>, vector<2x8x256xf32>
    %cst = arith.constant dense<0.000000e+00> : vector<2x8xf32>
    %1 = vector.multi_reduction <add>, %0, %cst [2] : vector<2x8x256xf32> to vector<2x8xf32>
    %cst_2 = arith.constant 3.906250e-03 : f32
    %2 = vector.broadcast %cst_2 : f32 to vector<2x8xf32>
    %3 = arith.mulf %1, %2 : vector<2x8xf32>
    %c0_3 = arith.constant 0 : index
    %c0_4 = arith.constant 0 : index
    %4 = vector.load %arg2[%c0_3, %c0_4] : memref<8x2xf32, #tpu.memory_space<vmem>>, vector<8x2xf32>
    %cst_5 = arith.constant dense<0.000000e+00> : vector<2x2xf32>
    %5 = tpu.matmul %3, %4, %cst_5 {dimension_numbers = #tpu.dot_dimension_numbers<[1], [0], [0], [1], [0, 0, 1, 1], [], []>} : vector<2x8xf32>, vector<8x2xf32>, vector<2x2xf32> -> vector<2x2xf32>
    %c0_6 = arith.constant 0 : index
    %c0_7 = arith.constant 0 : index
    %6 = vector.load %arg3[%c0_6, %c0_7] : memref<1x2xf32, #tpu.memory_space<vmem>>, vector<1x2xf32>
    %7 = vector.broadcast %6 : vector<1x2xf32> to vector<2x2xf32>
    %8 = arith.mulf %5, %7 : vector<2x2xf32>
    %c0_8 = arith.constant 0 : index
    %c0_9 = arith.constant 0 : index
    %9 = vector.load %arg4[%c0_8, %c0_9] : memref<1x2xf32, #tpu.memory_space<vmem>>, vector<1x2xf32>
    %10 = vector.broadcast %9 : vector<1x2xf32> to vector<2x2xf32>
    %11 = arith.addf %8, %10 : vector<2x2xf32>
    %cst_10 = arith.constant 0.000000e+00 : f32
    %12 = vector.broadcast %cst_10 : f32 to vector<2x2xf32>
    %13 = arith.maximumf %11, %12 : vector<2x2xf32>
    %c0_11 = arith.constant 0 : index
    %c0_12 = arith.constant 0 : index
    %14 = vector.load %arg5[%c0_11, %c0_12] : memref<2x8xf32, #tpu.memory_space<vmem>>, vector<2x8xf32>
    %cst_13 = arith.constant dense<0.000000e+00> : vector<2x8xf32>
    %15 = tpu.matmul %13, %14, %cst_13 {dimension_numbers = #tpu.dot_dimension_numbers<[1], [0], [0], [1], [0, 0, 1, 1], [], []>} : vector<2x2xf32>, vector<2x8xf32>, vector<2x8xf32> -> vector<2x8xf32>
    %c0_14 = arith.constant 0 : index
    %c0_15 = arith.constant 0 : index
    %16 = vector.load %arg6[%c0_14, %c0_15] : memref<1x8xf32, #tpu.memory_space<vmem>>, vector<1x8xf32>
    %17 = vector.broadcast %16 : vector<1x8xf32> to vector<2x8xf32>
    %18 = arith.mulf %15, %17 : vector<2x8xf32>
    %c0_16 = arith.constant 0 : index
    %c0_17 = arith.constant 0 : index
    %19 = vector.load %arg7[%c0_16, %c0_17] : memref<1x8xf32, #tpu.memory_space<vmem>>, vector<1x8xf32>
    %20 = vector.broadcast %19 : vector<1x8xf32> to vector<2x8xf32>
    %21 = arith.addf %18, %20 : vector<2x8xf32>
    %cst_18 = arith.constant 3.000000e+00 : f32
    %22 = vector.broadcast %cst_18 : f32 to vector<2x8xf32>
    %23 = arith.addf %21, %22 : vector<2x8xf32>
    %cst_19 = arith.constant 0.000000e+00 : f32
    %cst_20 = arith.constant 6.000000e+00 : f32
    %24 = vector.broadcast %cst_19 : f32 to vector<2x8xf32>
    %25 = arith.maximumf %24, %23 : vector<2x8xf32>
    %26 = vector.broadcast %cst_20 : f32 to vector<2x8xf32>
    %27 = arith.minimumf %26, %25 : vector<2x8xf32>
    %cst_21 = arith.constant 0.166666672 : f32
    %28 = vector.broadcast %cst_21 : f32 to vector<2x8xf32>
    %29 = arith.mulf %27, %28 : vector<2x8xf32>
    %c0_22 = arith.constant 0 : index
    %c0_23 = arith.constant 0 : index
    %c0_24 = arith.constant 0 : index
    %30 = vector.load %arg1[%c0_22, %c0_23, %c0_24] : memref<2x8x256xf32, #tpu.memory_space<vmem>>, vector<2x8x256xf32>
    %31 = vector.shape_cast %29 : vector<2x8xf32> to vector<2x8x1xf32>
    %32 = vector.broadcast %31 : vector<2x8x1xf32> to vector<2x8x256xf32>
    %33 = arith.mulf %30, %32 : vector<2x8x256xf32>
    %c0_25 = arith.constant 0 : index
    %c0_26 = arith.constant 0 : index
    %c0_27 = arith.constant 0 : index
    %34 = vector.load %arg8[%c0_25, %c0_26, %c0_27] : memref<2x8x256xf32, #tpu.memory_space<vmem>>, vector<2x8x256xf32>
    tpu.vector_store %arg8[%c0_25, %c0_26, %c0_27], %33 {strides = array<i32>} : memref<2x8x256xf32, #tpu.memory_space<vmem>>, vector<2x8x256xf32>,
    return
  }
  func.func @transform_0(%arg0: i32) -> (i32, i32, i32) {
    %c0_i32 = arith.constant 0 : i32
    %c0_i32_0 = arith.constant 0 : i32
    %c0_i32_1 = arith.constant 0 : i32
    return %arg0, %c0_i32, %c0_i32_0 : i32, i32, i32
  }
  func.func @transform_1(%arg0: i32) -> (i32, i32) {
    %c0_i32 = arith.constant 0 : i32
    %c0_i32_0 = arith.constant 0 : i32
    %c0_i32_1 = arith.constant 0 : i32
    return %c0_i32, %c0_i32_0 : i32, i32
  }
  func.func @transform_2(%arg0: i32) -> (i32, i32) {
    %c0_i32 = arith.constant 0 : i32
    %c0_i32_0 = arith.constant 0 : i32
    %c0_i32_1 = arith.constant 0 : i32
    return %c0_i32, %c0_i32_0 : i32, i32
  }
  func.func @transform_3(%arg0: i32) -> (i32, i32) {
    %c0_i32 = arith.constant 0 : i32
    %c0_i32_0 = arith.constant 0 : i32
    %c0_i32_1 = arith.constant 0 : i32
    return %c0_i32, %c0_i32_0 : i32, i32
  }
  func.func @transform_4(%arg0: i32) -> (i32, i32) {
    %c0_i32 = arith.constant 0 : i32
    %c0_i32_0 = arith.constant 0 : i32
    %c0_i32_1 = arith.constant 0 : i32
    return %c0_i32, %c0_i32_0 : i32, i32
  }
  func.func @transform_5(%arg0: i32) -> (i32, i32) {
    %c0_i32 = arith.constant 0 : i32
    %c0_i32_0 = arith.constant 0 : i32
    %c0_i32_1 = arith.constant 0 : i32
    return %c0_i32, %c0_i32_0 : i32, i32
  }
  func.func @transform_6(%arg0: i32) -> (i32, i32) {
    %c0_i32 = arith.constant 0 : i32
    %c0_i32_0 = arith.constant 0 : i32
    %c0_i32_1 = arith.constant 0 : i32
    return %c0_i32, %c0_i32_0 : i32, i32
  }
  func.func @transform_7(%arg0: i32) -> (i32, i32, i32) {
    %c0_i32 = arith.constant 0 : i32
    %c0_i32_0 = arith.constant 0 : i32
    %c0_i32_1 = arith.constant 0 : i32
    return %arg0, %c0_i32, %c0_i32_0 : i32, i32, i32
  }
}

</mosaic_0001>

<llo_original>
// kernel: tpu_custom_call.1
$region0: #{tpu_custom_call.1}
  #allocation0 [shape = 'u32[]', space=smem, size = 0x4, offset = 0x4, fixed_abs, tag = 'smem constant byte address 0x4 - core index']
  #allocation1 [shape = 'u32[144,128]{1,0:T(1,128)}', space=vmem, size = 0x12000, scoped, tag = 'internal scratch']
  %s0 = inlined_call_operand.hbm [shape: f32[2,8,256], index: 0, kind: input, shape index: {}]
  %s1 = inlined_call_operand.vmem [shape: f32[8,2], index: 1, kind: input, shape index: {}]
  %s2 = inlined_call_operand.vmem [shape: f32[1,2], index: 2, kind: input, shape index: {}]
  %s3 = inlined_call_operand.vmem [shape: f32[1,2], index: 3, kind: input, shape index: {}]
  %s4 = inlined_call_operand.vmem [shape: f32[2,8], index: 4, kind: input, shape index: {}]
  %s5 = inlined_call_operand.vmem [shape: f32[1,8], index: 5, kind: input, shape index: {}]
  %s6 = inlined_call_operand.vmem [shape: f32[1,8], index: 6, kind: input, shape index: {}]
  %s7 = inlined_call_operand.hbm [shape: f32[2,8,256], index: 7, kind: output, shape index: {}]
  %s8 = sld [smem:[#allocation0]]
  $region42: #{tpu_custom_call.1} parent=0
    _
  %s10 = ssub.s32 1, %s8
  %s11 = scalar_select 0, %s10, %s8
  $region1: #{tpu_custom_call.1} parent=0
    #allocation2 [shape = 'u8[16384]{0}', space=vmem, size = 0x4000, scoped, tag = 'input window, operand 0, single buffered']
    #allocation3 [shape = 's32[1]{0}', space=sflag, size = 0x4, scoped, tag = 'scoped memory for tpu_custom_call.1']
    #allocation4 [shape = 's32[1]{0}', space=sflag, size = 0x4, scoped, tag = 'scoped memory for tpu_custom_call.1']
    #allocation5 [shape = 'u8[16384]{0}', space=vmem, size = 0x4000, scoped, tag = 'output window, operand 0, single buffered']
    %12 = vsyncpa [#allocation3], 0
    %13 = vsyncpa [#allocation4], 0
    // Predicated region
    $region2: #{tpu_custom_call.1} parent=1 // pred_check
      _
    $region3: #{tpu_custom_call.1} parent=1 // pred_check_branch
      %15 = sbr.rel (0) target = $region5
    $region4: #{tpu_custom_call.1} parent=1 // pred_region
      %s17 = ssub.s32 512, 512
      %18 = vsyncadd [#allocation3], %s17
      %s19 = sshll.u32 [#allocation2], 4
      %s20 = int_to_ptr.vmem [resolvable:$true] %s19
      %25 = dma.hbm_to_vmem [thread:$0]  %s0, 512, %s20, [#allocation3], 256, 256, 16
    $region5: #{tpu_custom_call.1} parent=1 // pred_fallthru
      _
    // Predicated region
    $region6: #{tpu_custom_call.1} parent=1 // pred_check
      _
    $region7: #{tpu_custom_call.1} parent=1 // pred_check_branch
      %27 = sbr.rel (0) target = $region9
    $region8: #{tpu_custom_call.1} parent=1 // pred_region
      _
    $region9: #{tpu_custom_call.1} parent=1 // pred_fallthru
      _
    // Predicated region
    $region10: #{tpu_custom_call.1} parent=1 // pred_check
      _
    $region11: #{tpu_custom_call.1} parent=1 // pred_check_branch
      %29 = sbr.rel (0) target = $region13
    $region12: #{tpu_custom_call.1} parent=1 // pred_region
      _
    $region13: #{tpu_custom_call.1} parent=1 // pred_fallthru
      _
    // Predicated region
    $region14: #{tpu_custom_call.1} parent=1 // pred_check
      _
    $region15: #{tpu_custom_call.1} parent=1 // pred_check_branch
      %31 = sbr.rel (0) target = $region17
    $region16: #{tpu_custom_call.1} parent=1 // pred_region
      _
    $region17: #{tpu_custom_call.1} parent=1 // pred_fallthru
      _
    // Predicated region
    $region18: #{tpu_custom_call.1} parent=1 // pred_check
      _
    $region19: #{tpu_custom_call.1} parent=1 // pred_check_branch
      %33 = sbr.rel (0) target = $region21
    $region20: #{tpu_custom_call.1} parent=1 // pred_region
      _
    $region21: #{tpu_custom_call.1} parent=1 // pred_fallthru
      _
    // Predicated region
    $region22: #{tpu_custom_call.1} parent=1 // pred_check
      _
    $region23: #{tpu_custom_call.1} parent=1 // pred_check_branch
      %35 = sbr.rel (0) target = $region25
    $region24: #{tpu_custom_call.1} parent=1 // pred_region
      _
    $region25: #{tpu_custom_call.1} parent=1 // pred_fallthru
      _
    // Predicated region
    $region26: #{tpu_custom_call.1} parent=1 // pred_check
      _
    $region27: #{tpu_custom_call.1} parent=1 // pred_check_branch
      %37 = sbr.rel (0) target = $region29
    $region28: #{tpu_custom_call.1} parent=1 // pred_region
      _
    $region29: #{tpu_custom_call.1} parent=1 // pred_fallthru
      _
    // Predicated region
    $region30: #{tpu_custom_call.1} parent=1 // pred_check
      _
    $region31: #{tpu_custom_call.1} parent=1 // pred_check_branch
      %39 = sbr.rel (0) target = $region33
    $region32: #{tpu_custom_call.1} parent=1 // pred_region
      %40 = dma.done [#allocation3], 512
    $region33: #{tpu_custom_call.1} parent=1 // pred_fallthru
      _
    %v41 = vld [vmem:[#allocation2] sm:$0xff]
    %v42 = vld [vmem:[#allocation2 + $0x8] sm:$0xff]
    %v43 = vld [vmem:[#allocation2 + $0x10] sm:$0xff]
    %v44 = vld [vmem:[#allocation2 + $0x18] sm:$0xff]
    %v45 = vadd.f32 %v41, %v42
    %46 = vadd.xlane.f32.xlu0 %v45
    %v47 = vpop.xlane.xlu0 %46
    %v48 = vadd.f32 %v43, %v44
    %49 = vadd.xlane.f32.xlu0 %v48
    %v50 = vpop.xlane.xlu0 %49
    %v51 = vmul.f32 %v47, 0.00390625
    %v52 = vmul.f32 %v50, 0.00390625
    %v53 = vld [vmem:[%s1] sm:$0xff]
    %v56 = vlaneseq
    %v57 = vand.u32 %v56, 127
    %v58 = vlaneseq
    %v59 = vshrl.u32 %v58, 7
    %v60 = vsub.s32 %v57, %v59
    %v61 = vrot.slane %v51, %v60
    %v62 = vlaneseq
    %v63 = vshrl.u32 %v62, 7
    %v64 = vsub.s32 %v57, %v63
    %v65 = vrot.slane %v52, %v64
    %vm66 = vcmask 1041409
    %v67 = vsel %vm66, %v65, %v61
    %vm68 = vcmask 64512
    %v69 = vsel %vm68, %v67, 0
    %71 = vmatprep.subr.mxu0 0.0
    %72 = vmatpush1.msra.mxu0 %v53
    %73 = vmatprep.subr.mxu0 0.0
    %74 = vmatpush1.msra.mxu0 0.0
    %75 = vmatprep.subr.mxu0 0.0
    %76 = vmatpush1.msra.mxu0 0.0
    %77 = vmatprep.subr.mxu0 0.0
    %78 = vmatpush1.msra.mxu0 0.0
    %79 = vmatprep.subr.mxu0 0.0
    %80 = vmatpush1.msra.mxu0 0.0
    %81 = vmatprep.subr.mxu0 0.0
    %82 = vmatpush1.msra.mxu0 0.0
    %83 = vmatprep.subr.mxu0 0.0
    %84 = vmatpush1.msra.mxu0 0.0
    %85 = vmatprep.subr.mxu0 0.0
    %86 = vmatpush1.msra.mxu0 0.0
    %87 = vmatprep.subr.mxu0 0.0
    %88 = vmatpush1.msra.mxu0 0.0
    %89 = vmatprep.subr.mxu0 0.0
    %90 = vmatpush1.msra.mxu0 0.0
    %91 = vmatprep.subr.mxu0 0.0
    %92 = vmatpush1.msra.mxu0 0.0
    %93 = vmatprep.subr.mxu0 0.0
    %94 = vmatpush1.msra.mxu0 0.0
    %95 = vmatprep.subr.mxu0 0.0
    %96 = vmatpush1.msra.mxu0 0.0
    %97 = vmatprep.subr.mxu0 0.0
    %98 = vmatpush1.msra.mxu0 0.0
    %99 = vmatprep.subr.mxu0 0.0
    %100 = vmatpush1.msra.mxu0 0.0
    %101 = vmatprep.subr.mxu0 0.0
    %102 = vmatpush1.msra.mxu0 0.0
    %103 = vmatprep.subr.mxu0 0.0
    %104 = vmatpush1.msra.mxu0 0.0
    %105 = vmatprep.subr.mxu0 0.0
    %106 = vmatpush1.msra.mxu0 0.0
    %107 = vmatprep.subr.mxu0 0.0
    %108 = vmatpush1.msra.mxu0 0.0
    %109 = vmatprep.subr.mxu0 0.0
    %110 = vmatpush1.msra.mxu0 0.0
    %111 = vmatprep.subr.mxu0 0.0
    %112 = vmatpush1.msra.mxu0 0.0
    %113 = vmatprep.subr.mxu0 0.0
    %114 = vmatpush1.msra.mxu0 0.0
    %115 = vmatprep.subr.mxu0 0.0
    %116 = vmatpush1.msra.mxu0 0.0
    %117 = vmatprep.subr.mxu0 0.0
    %118 = vmatpush1.msra.mxu0 0.0
    %119 = vmatprep.subr.mxu0 0.0
    %120 = vmatpush1.msra.mxu0 0.0
    %121 = vmatprep.subr.mxu0 0.0
    %122 = vmatpush1.msra.mxu0 0.0
    %123 = vmatprep.subr.mxu0 0.0
    %124 = vmatpush1.msra.mxu0 0.0
    %125 = vmatprep.subr.mxu0 0.0
    %126 = vmatpush1.msra.mxu0 0.0
    %127 = vmatprep.subr.mxu0 0.0
    %128 = vmatpush1.msra.mxu0 0.0
    %129 = vmatprep.subr.mxu0 0.0
    %130 = vmatpush1.msra.mxu0 0.0
    %131 = vmatprep.subr.mxu0 0.0
    %132 = vmatpush1.msra.mxu0 0.0
    %133 = vmatprep.subr.mxu0 0.0
    %134 = vmatpush1.msra.mxu0 0.0
    %135 = vmatprep.mubr.f32.mxu0 0.0
    %136 = vmatmul.mubr.f32.gmra.mrb[0].mxu0 %v69
    %v137 = vpop.f32.mrb[0].mxu0
    %v138 = vadd.f32 0.0, %v137
    %v139 = vpop.f32.mrb[0].mxu0
    %140 = vdwg.mxu0
    %v141 = vld [vmem:[%s2] sm:$0x1]
    %v143 = vlaneseq
    %v144 = vshrl.u32 %v143, 7
    %v145 = vsub.s32 0, %v144
    %v146 = vrot.slane %v141, %v145
    %v148 = vmul.f32 %v138, %v146
    %v149 = vld [vmem:[%s3] sm:$0x1]
    %v151 = vlaneseq
    %v152 = vshrl.u32 %v151, 7
    %v153 = vsub.s32 0, %v152
    %v154 = vrot.slane %v149, %v153
    %v156 = vadd.f32 %v148, %v154
    %v157 = vmax.f32 %v156, 0.0
    %v158 = vld [vmem:[%s4] sm:$0x3]
    %vm159 = vcmask 15360
    %v161 = vsel %vm159, %v157, 0
    %vm163 = vcmask 1041408
    %v165 = vsel %vm163, %v158, 0
    %167 = vmatprep.subr.mxu0 0.0
    %168 = vmatpush1.msra.mxu0 %v165
    %169 = vmatprep.subr.mxu0 0.0
    %170 = vmatpush1.msra.mxu0 0.0
    %171 = vmatprep.subr.mxu0 0.0
    %172 = vmatpush1.msra.mxu0 0.0
    %173 = vmatprep.subr.mxu0 0.0
    %174 = vmatpush1.msra.mxu0 0.0
    %175 = vmatprep.subr.mxu0 0.0
    %176 = vmatpush1.msra.mxu0 0.0
    %177 = vmatprep.subr.mxu0 0.0
    %178 = vmatpush1.msra.mxu0 0.0
    %179 = vmatprep.subr.mxu0 0.0
    %180 = vmatpush1.msra.mxu0 0.0
    %181 = vmatprep.subr.mxu0 0.0
    %182 = vmatpush1.msra.mxu0 0.0
    %183 = vmatprep.subr.mxu0 0.0
    %184 = vmatpush1.msra.mxu0 0.0
    %185 = vmatprep.subr.mxu0 0.0
    %186 = vmatpush1.msra.mxu0 0.0
    %187 = vmatprep.subr.mxu0 0.0
    %188 = vmatpush1.msra.mxu0 0.0
    %189 = vmatprep.subr.mxu0 0.0
    %190 = vmatpush1.msra.mxu0 0.0
    %191 = vmatprep.subr.mxu0 0.0
    %192 = vmatpush1.msra.mxu0 0.0
    %193 = vmatprep.subr.mxu0 0.0
    %194 = vmatpush1.msra.mxu0 0.0
    %195 = vmatprep.subr.mxu0 0.0
    %196 = vmatpush1.msra.mxu0 0.0
    %197 = vmatprep.subr.mxu0 0.0
    %198 = vmatpush1.msra.mxu0 0.0
    %199 = vmatprep.subr.mxu0 0.0
    %200 = vmatpush1.msra.mxu0 0.0
    %201 = vmatprep.subr.mxu0 0.0
    %202 = vmatpush1.msra.mxu0 0.0
    %203 = vmatprep.subr.mxu0 0.0
    %204 = vmatpush1.msra.mxu0 0.0
    %205 = vmatprep.subr.mxu0 0.0
    %206 = vmatpush1.msra.mxu0 0.0
    %207 = vmatprep.subr.mxu0 0.0
    %208 = vmatpush1.msra.mxu0 0.0
    %209 = vmatprep.subr.mxu0 0.0
    %210 = vmatpush1.msra.mxu0 0.0
    %211 = vmatprep.subr.mxu0 0.0
    %212 = vmatpush1.msra.mxu0 0.0
    %213 = vmatprep.subr.mxu0 0.0
    %214 = vmatpush1.msra.mxu0 0.0
    %215 = vmatprep.subr.mxu0 0.0
    %216 = vmatpush1.msra.mxu0 0.0
    %217 = vmatprep.subr.mxu0 0.0
    %218 = vmatpush1.msra.mxu0 0.0
    %219 = vmatprep.subr.mxu0 0.0
    %220 = vmatpush1.msra.mxu0 0.0
    %221 = vmatprep.subr.mxu0 0.0
    %222 = vmatpush1.msra.mxu0 0.0
    %223 = vmatprep.subr.mxu0 0.0
    %224 = vmatpush1.msra.mxu0 0.0
    %225 = vmatprep.subr.mxu0 0.0
    %226 = vmatpush1.msra.mxu0 0.0
    %227 = vmatprep.subr.mxu0 0.0
    %228 = vmatpush1.msra.mxu0 0.0
    %229 = vmatprep.subr.mxu0 0.0
    %230 = vmatpush1.msra.mxu0 0.0
    %231 = vmatprep.mubr.f32.mxu0 0.0
    %232 = vmatmul.mubr.f32.gmra.mrb[0].mxu0 %v161
    %v233 = vpop.f32.mrb[0].mxu0
    %v234 = vadd.f32 0.0, %v233
    %v235 = vpop.f32.mrb[0].mxu0
    %236 = vdwg.mxu0
    %v237 = vld [vmem:[%s5] sm:$0x1]
    %v239 = vlaneseq
    %v240 = vshrl.u32 %v239, 7
    %v241 = vsub.s32 0, %v240
    %v242 = vrot.slane %v237, %v241
    %v244 = vmul.f32 %v234, %v242
    %v245 = vld [vmem:[%s6] sm:$0x1]
    %v247 = vlaneseq
    %v248 = vshrl.u32 %v247, 7
    %v249 = vsub.s32 0, %v248
    %v250 = vrot.slane %v245, %v249
    %v252 = vadd.f32 %v244, %v250
    %v253 = vadd.f32 %v252, 3.0
    %v254 = vmax.f32 %v253, 0.0
    %v255 = vmin.f32 %v254, 6.0
    %v256 = vmul.f32 %v255, 0.16666667
    %v257 = vlaneseq
    %v258 = vshrl.u32 %v257, 7
    %v259 = vsub.s32 0, %v258
    %v260 = vrot.slane %v256, %v259
    %262 = vbcast.lane.b32.xlu0 %v260, 256
    %v263 = vpop.permute.xlu0 %262
    %v264 = vlaneseq
    %v265 = vshrl.u32 %v264, 7
    %v266 = vsub.s32 1, %v265
    %v267 = vrot.slane %v256, %v266
    %269 = vbcast.lane.b32.xlu0 %v267, 256
    %v270 = vpop.permute.xlu0 %269
    %v271 = vmul.f32 %v41, %v263
    %v272 = vmul.f32 %v42, %v263
    %v273 = vmul.f32 %v43, %v270
    %v274 = vmul.f32 %v44, %v270
    %275 = vst [vmem:[#allocation5] sm:$0xff] %v271
    %276 = vst [vmem:[#allocation5 + $0x8] sm:$0xff] %v272
    %277 = vst [vmem:[#allocation5 + $0x10] sm:$0xff] %v273
    %278 = vst [vmem:[#allocation5 + $0x18] sm:$0xff] %v274
    // Predicated region
    $region34: #{tpu_custom_call.1} parent=1 // pred_check
      _
    $region35: #{tpu_custom_call.1} parent=1 // pred_check_branch
      %280 = sbr.rel (0) target = $region37
    $region36: #{tpu_custom_call.1} parent=1 // pred_region
      %s282 = ssub.s32 512, 512
      %283 = vsyncadd [#allocation4], %s282
      %s284 = sshll.u32 [#allocation5], 4
      %s285 = int_to_ptr.vmem [resolvable:$true] %s284
      %290 = dma.vmem_to_hbm [thread:$0]  %s285, 512, %s7, [#allocation4], 256, 256, 16
    $region37: #{tpu_custom_call.1} parent=1 // pred_fallthru
      _
    // Predicated region
    $region38: #{tpu_custom_call.1} parent=1 // pred_check
      _
    $region39: #{tpu_custom_call.1} parent=1 // pred_check_branch
      %292 = sbr.rel (0) target = $region41
    $region40: #{tpu_custom_call.1} parent=1 // pred_region
      %293 = dma.done [#allocation4], 512
    $region41: #{tpu_custom_call.1} parent=1 // pred_fallthru
      _
    %294 = vsyncpa [#allocation3], 1
    %295 = vsyncpa [#allocation4], 1

</llo_original>
